<compile_context>
chip_gen: v5e
topology: v5e:2x2
jax: 0.10.0
libtpu: 0.0.40
codegen_flags: <defaults>
</compile_context>

<pallas_src>
import functools

import jax
import jax.numpy as jnp
from jax.experimental import pallas as pl
from jax.experimental.pallas import tpu as pltpu


def _round_up(x, m):
    return ((x + m - 1) // m) * m


def _patch_embed_kernel(x_ref, w_ref, b_ref, o_ref, *, tl):
    """One (batch b, L-tile j) step: 3-tap Conv1d as three shifted MXU dots.

    x_ref: (1, L_pad + 2, C_in)  -- full zero-padded sequence of batch b (resident)
    w_ref: (3, C_in, embed)      -- resident weights, w_ref[t][c, o] == W[o, c, t]
    b_ref: (1, embed)            -- f32 bias (resident)
    o_ref: (1, tl, embed)        -- output rows [j*tl, (j+1)*tl)
    """
    j = pl.program_id(1)
    start = pl.multiple_of(j * tl, tl)

    acc = jnp.zeros((tl, o_ref.shape[-1]), jnp.float32)
    for t in range(3):  # static unroll over the 3 conv taps
        xt = x_ref[0, pl.ds(start + t, tl), :]              # (tl, C_in)
        acc += jnp.dot(xt, w_ref[t], preferred_element_type=jnp.float32)

    o_ref[0] = (acc + b_ref[...]).astype(o_ref.dtype)


@functools.partial(jax.jit, static_argnames=("compute_dtype", "max_tl"))
def patch_embedding_forward(x, w, b, *, compute_dtype=jnp.bfloat16, max_tl=512):
    """PatchEmbedding forward: Conv1d(C_in, embed, k=3, s=1, p=1) then transpose(1, 2).

    x: (B, C_in, L)           -- PyTorch Conv1d input layout
    w: (embed_dim, C_in, 3)   -- PyTorch Conv1d weight
    b: (embed_dim,)           -- Conv1d bias
    returns: (B, L, embed_dim) in x.dtype  (== self.proj(x).transpose(1, 2))
    """
    B, C_in, L = x.shape
    embed_dim = w.shape[0]
    out_dtype = x.dtype
    c_itemsize = jnp.dtype(compute_dtype).itemsize
    o_itemsize = jnp.dtype(out_dtype).itemsize

    # ---- L-tile selection ---------------------------------------------------
    # Keep the double-buffered output tile <= ~8 MiB so the total footprint is
    # comfortable on v7x (64 MiB VMEM) and trivially fits v5e/v6e (128 MiB).
    row_bytes = embed_dim * max(o_itemsize, 4)
    row_cap = max(8, ((8 << 20) // row_bytes) // 8 * 8)
    tl_cap = min(max_tl, row_cap)
    if L <= tl_cap:
        tl = L
        if B == 1 and L >= 16:
            # v7x megacore: make sure the "parallel" grid has at least 2 tiles.
            tl = _round_up((L + 1) // 2, 8)
    else:
        tl = tl_cap
    L_pad = _round_up(L, tl)
    n_lt = L_pad // tl

    # ---- layout prep (single pass; NO im2col / 3x concat) --------------------
    x_t = jnp.transpose(x, (0, 2, 1)).astype(compute_dtype)        # (B, L, C_in)
    x_p = jnp.pad(x_t, ((0, 0), (1, 1 + (L_pad - L)), (0, 0)))     # (B, L_pad+2, C_in)
    w_r = jnp.transpose(w, (2, 1, 0)).astype(compute_dtype)        # (3, C_in, embed)
    b2d = b.reshape(1, embed_dim).astype(jnp.float32)

    # ---- VMEM budget derived from the actual tile footprint ------------------
    x_blk = (L_pad + 2) * C_in * c_itemsize
    w_blk = 3 * C_in * embed_dim * c_itemsize
    o_blk = tl * embed_dim * o_itemsize
    bias_blk = embed_dim * 4
    vmem_bytes = 2 * (x_blk + w_blk + o_blk + bias_blk) + (4 << 20)
    vmem_limit = int(min(max(vmem_bytes, 32 << 20), 48 << 20))

    cost = pl.CostEstimate(
        flops=int(2 * B * L_pad * 3 * C_in * embed_dim),
        transcendentals=0,
        bytes_accessed=int(x_p.size * c_itemsize + w_r.size * c_itemsize
                           + b2d.size * 4 + B * L_pad * embed_dim * o_itemsize),
    )

    kernel = functools.partial(_patch_embed_kernel, tl=tl)

    out = pl.pallas_call(
        kernel,
        out_shape=jax.ShapeDtypeStruct((B, L_pad, embed_dim), out_dtype),
        grid_spec=pltpu.PrefetchScalarGridSpec(
            num_scalar_prefetch=0,
            grid=(B, n_lt),
            in_specs=[
                # full padded sequence of batch b; constant across the inner
                # L-tile axis -> DMA'd from HBM exactly once per batch row
                pl.BlockSpec((1, L_pad + 2, C_in), lambda bb, j: (bb, 0, 0)),
                # weights fully resident (fetched once)
                pl.BlockSpec((3, C_in, embed_dim), lambda bb, j: (0, 0, 0)),
                # bias resident
                pl.BlockSpec((1, embed_dim), lambda bb, j: (0, 0)),
            ],
            out_specs=pl.BlockSpec((1, tl, embed_dim), lambda bb, j: (bb, j, 0)),
        ),
        compiler_params=pltpu.CompilerParams(
            dimension_semantics=("parallel", "parallel"),
            vmem_limit_bytes=vmem_limit,
        ),
        cost_estimate=cost,
    )(x_p, w_r, b2d)

    if L_pad != L:
        out = out[:, :L, :]
    return out


def init_patch_embedding_params(key, in_channels, embed_dim, dtype=jnp.float32):
    """Deterministic init matching nn.Conv1d shapes: w (embed, C_in, 3), b (embed,)."""
    kw, kb = jax.random.split(key)
    lim = 1.0 / (3.0 * in_channels) ** 0.5
    w = jax.random.uniform(kw, (embed_dim, in_channels, 3), dtype, -lim, lim)
    b = jax.random.uniform(kb, (embed_dim,), dtype, -lim, lim)
    return w, b


if __name__ == "__main__":
    key = jax.random.PRNGKey(0)
    kx, kp = jax.random.split(key)

    B, C_in, L, embed_dim = 2, 4, 16, 32

    x = jax.random.normal(kx, (B, C_in, L), jnp.float32)
    w, b = init_patch_embedding_params(kp, C_in, embed_dim)

    # Pure-JAX reference: Conv1d(k=3, s=1, p=1) then transpose(1, 2).
    ref = jax.lax.conv_general_dilated(
        x, w, window_strides=(1,), padding=((1, 1),),
        dimension_numbers=("NCH", "OIH", "NCH"))
    ref = jnp.transpose(ref + b[None, :, None], (0, 2, 1))

    # Exact-precision path (f32 operands on the MXU) -- tight tolerance.
    out_f32 = patch_embedding_forward(x, w, b, compute_dtype=jnp.float32)
    jax.block_until_ready(out_f32)
    assert out_f32.shape == (B, L, embed_dim)
    assert jnp.allclose(out_f32, ref, atol=1e-5, rtol=1e-5), "f32 path mismatch"

    # Default fast path: bf16 operands, f32 accumulation -- loose tolerance.
    out_bf16 = patch_embedding_forward(x, w, b)
    jax.block_until_ready(out_bf16)
    assert out_bf16.shape == (B, L, embed_dim)
    assert jnp.allclose(out_bf16, ref, atol=5e-2, rtol=5e-2), "bf16 path mismatch"

    print("KERNEL_OK")
</pallas_src>

<mosaic_0001>
module attributes {stable_mosaic.version = 11 : i64} {
  func.func @_patch_embed_kernel(%arg0: i32, %arg1: i32, %arg2: memref<1x18x4xf32, #tpu.memory_space<vmem>>, %arg3: memref<3x4x32xf32, #tpu.memory_space<vmem>>, %arg4: memref<1x32xf32, #tpu.memory_space<vmem>>, %arg5: memref<1x16x32xf32, #tpu.memory_space<vmem>>) attributes {dimension_semantics = [#tpu.dimension_semantics<parallel>, #tpu.dimension_semantics<parallel>], iteration_bounds = array<i64: 2, 1>, scalar_prefetch = 0 : i64, scratch_operands = 0 : i64, tpu.core_type = #tpu.core_type<tc>, window_params = [{transform_indices = @transform_0, window_bounds = array<i64: 1, 18, 4>}, {pipeline_mode = #tpu.pipeline_mode<synchronous>, transform_indices = @transform_1, window_bounds = array<i64: 3, 4, 32>}, {pipeline_mode = #tpu.pipeline_mode<synchronous>, transform_indices = @transform_2, window_bounds = array<i64: 1, 32>}, {transform_indices = @transform_3, window_bounds = array<i64: 1, 16, 32>}]} {
    %c16_i32 = arith.constant 16 : i32
    %0 = arith.muli %arg1, %c16_i32 : i32
    %1 = tpu.assume_multiple %0, 16 : i32
    %cst = arith.constant 0.000000e+00 : f32
    %2 = vector.broadcast %cst : f32 to vector<16x32xf32>
    %c0_i32 = arith.constant 0 : i32
    %3 = arith.addi %1, %c0_i32 : i32
    %c0 = arith.constant 0 : index
    %4 = arith.index_cast %3 : i32 to index
    %c0_0 = arith.constant 0 : index
    %5 = vector.load %arg2[%c0, %4, %c0_0] : memref<1x18x4xf32, #tpu.memory_space<vmem>>, vector<1x16x4xf32>
    %6 = vector.shape_cast %5 : vector<1x16x4xf32> to vector<16x4xf32>
    %c0_1 = arith.constant 0 : index
    %c0_2 = arith.constant 0 : index
    %c0_3 = arith.constant 0 : index
    %7 = vector.load %arg3[%c0_1, %c0_2, %c0_3] : memref<3x4x32xf32, #tpu.memory_space<vmem>>, vector<1x4x32xf32>
    %8 = vector.shape_cast %7 : vector<1x4x32xf32> to vector<4x32xf32>
    %cst_4 = arith.constant dense<0.000000e+00> : vector<16x32xf32>
    %9 = tpu.matmul %6, %8, %cst_4 {dimension_numbers = #tpu.dot_dimension_numbers<[1], [0], [0], [1], [0, 0, 1, 1], [], []>} : vector<16x4xf32>, vector<4x32xf32>, vector<16x32xf32> -> vector<16x32xf32>
    %10 = arith.addf %2, %9 : vector<16x32xf32>
    %c1_i32 = arith.constant 1 : i32
    %11 = arith.addi %1, %c1_i32 : i32
    %c0_5 = arith.constant 0 : index
    %12 = arith.index_cast %11 : i32 to index
    %c0_6 = arith.constant 0 : index
    %13 = vector.load %arg2[%c0_5, %12, %c0_6] : memref<1x18x4xf32, #tpu.memory_space<vmem>>, vector<1x16x4xf32>
    %14 = vector.shape_cast %13 : vector<1x16x4xf32> to vector<16x4xf32>
    %c1 = arith.constant 1 : index
    %c0_7 = arith.constant 0 : index
    %c0_8 = arith.constant 0 : index
    %15 = vector.load %arg3[%c1, %c0_7, %c0_8] : memref<3x4x32xf32, #tpu.memory_space<vmem>>, vector<1x4x32xf32>
    %16 = vector.shape_cast %15 : vector<1x4x32xf32> to vector<4x32xf32>
    %cst_9 = arith.constant dense<0.000000e+00> : vector<16x32xf32>
    %17 = tpu.matmul %14, %16, %cst_9 {dimension_numbers = #tpu.dot_dimension_numbers<[1], [0], [0], [1], [0, 0, 1, 1], [], []>} : vector<16x4xf32>, vector<4x32xf32>, vector<16x32xf32> -> vector<16x32xf32>
    %18 = arith.addf %10, %17 : vector<16x32xf32>
    %c2_i32 = arith.constant 2 : i32
    %19 = arith.addi %1, %c2_i32 : i32
    %c0_10 = arith.constant 0 : index
    %20 = arith.index_cast %19 : i32 to index
    %c0_11 = arith.constant 0 : index
    %21 = vector.load %arg2[%c0_10, %20, %c0_11] : memref<1x18x4xf32, #tpu.memory_space<vmem>>, vector<1x16x4xf32>
    %22 = vector.shape_cast %21 : vector<1x16x4xf32> to vector<16x4xf32>
    %c2 = arith.constant 2 : index
    %c0_12 = arith.constant 0 : index
    %c0_13 = arith.constant 0 : index
    %23 = vector.load %arg3[%c2, %c0_12, %c0_13] : memref<3x4x32xf32, #tpu.memory_space<vmem>>, vector<1x4x32xf32>
    %24 = vector.shape_cast %23 : vector<1x4x32xf32> to vector<4x32xf32>
    %cst_14 = arith.constant dense<0.000000e+00> : vector<16x32xf32>
    %25 = tpu.matmul %22, %24, %cst_14 {dimension_numbers = #tpu.dot_dimension_numbers<[1], [0], [0], [1], [0, 0, 1, 1], [], []>} : vector<16x4xf32>, vector<4x32xf32>, vector<16x32xf32> -> vector<16x32xf32>
    %26 = arith.addf %18, %25 : vector<16x32xf32>
    %c0_15 = arith.constant 0 : index
    %c0_16 = arith.constant 0 : index
    %27 = vector.load %arg4[%c0_15, %c0_16] : memref<1x32xf32, #tpu.memory_space<vmem>>, vector<1x32xf32>
    %28 = vector.broadcast %27 : vector<1x32xf32> to vector<16x32xf32>
    %29 = arith.addf %26, %28 : vector<16x32xf32>
    %c0_17 = arith.constant 0 : index
    %c0_18 = arith.constant 0 : index
    %c0_19 = arith.constant 0 : index
    %30 = vector.load %arg5[%c0_17, %c0_18, %c0_19] : memref<1x16x32xf32, #tpu.memory_space<vmem>>, vector<1x16x32xf32>
    %31 = vector.shape_cast %30 : vector<1x16x32xf32> to vector<16x32xf32>
    %32 = vector.shape_cast %29 : vector<16x32xf32> to vector<1x16x32xf32>
    tpu.vector_store %arg5[%c0_17, %c0_18, %c0_19], %32 {strides = array<i32>} : memref<1x16x32xf32, #tpu.memory_space<vmem>>, vector<1x16x32xf32>,
    return
  }
  func.func @transform_0(%arg0: i32, %arg1: i32) -> (i32, i32, i32) {
    %c0_i32 = arith.constant 0 : i32
    %c0_i32_0 = arith.constant 0 : i32
    %c0_i32_1 = arith.constant 0 : i32
    return %arg0, %c0_i32, %c0_i32_0 : i32, i32, i32
  }
  func.func @transform_1(%arg0: i32, %arg1: i32) -> (i32, i32, i32) {
    %c0_i32 = arith.constant 0 : i32
    %c0_i32_0 = arith.constant 0 : i32
    %c0_i32_1 = arith.constant 0 : i32
    %c0_i32_2 = arith.constant 0 : i32
    return %c0_i32, %c0_i32_0, %c0_i32_1 : i32, i32, i32
  }
  func.func @transform_2(%arg0: i32, %arg1: i32) -> (i32, i32) {
    %c0_i32 = arith.constant 0 : i32
    %c0_i32_0 = arith.constant 0 : i32
    %c0_i32_1 = arith.constant 0 : i32
    return %c0_i32, %c0_i32_0 : i32, i32
  }
  func.func @transform_3(%arg0: i32, %arg1: i32) -> (i32, i32, i32) {
    %c0_i32 = arith.constant 0 : i32
    %c0_i32_0 = arith.constant 0 : i32
    return %arg0, %arg1, %c0_i32 : i32, i32, i32
  }
}

</mosaic_0001>

<llo_original>
// kernel: patch_embedding_forward.1
$region0: #{patch_embedding_forward.1}
  #allocation0 [shape = 'u32[]', space=smem, size = 0x4, offset = 0x4, fixed_abs, tag = 'smem constant byte address 0x4 - core index']
  #allocation1 [shape = 'u32[72,128]{1,0:T(1,128)}', space=vmem, size = 0x9000, scoped, tag = 'internal scratch']
  %s0 = inlined_call_operand.vmem [shape: f32[2,18,4], index: 0, kind: input, shape index: {}]
  %s1 = inlined_call_operand.vmem [shape: f32[3,4,32], index: 1, kind: input, shape index: {}]
  %s2 = inlined_call_operand.vmem [shape: f32[1,32], index: 2, kind: input, shape index: {}]
  %s3 = inlined_call_operand.hbm [shape: f32[2,16,32], index: 3, kind: output, shape index: {}]
  %s4 = sld [smem:[#allocation0]]
  $region45: #{patch_embedding_forward.1} parent=0
    _
  %s6 = ssub.s32 1, %s4
  %s7 = scalar_select 0, %s6, %s4
  $region1: #{patch_embedding_forward.1} parent=0
    #allocation2 [shape = 'u8[16384]{0}', space=vmem, size = 0x4000, scoped, tag = 'output window, operand 0']
    #allocation3 [shape = 's32[2]{0}', space=sflag, size = 0x8, scoped, tag = 'scoped memory for patch_embedding_forward.1']
    %8 = vsyncpa [#allocation3], 0
    %s9 = scalar_lea.sflag [#allocation3], 1
    %10 = vsyncpa %s9, 0
    loop: start=0, step=1, limit=4
    $region2: #{patch_embedding_forward.1} parent=1 // loop_pre_header
      _
    $region3: #{patch_embedding_forward.1} parent=1 // loop_header
      %s12 = sphi 0, %s16
      %p13 = scmp.ge.s32.totalorder %s12, 4
      %s19 = sphi 0, %s31
      %s20 = sphi 0, %s27
      %s21 = sphi 0, %s19
      %s22 = sphi 0, %s20
      %s23 = sphi 0, %s21
      %s24 = sphi 0, %s22
      %s34 = sphi 0, %s36
      %s37 = sphi 0, %s34
      %s38 = sphi 0, %s37
      %s54 = sphi 0, %s38
      %s58 = sphi 0, %s58
      %s60 = sphi 0, %s58
      %s61 = sphi 0, %s60
      %s75 = sphi 0, %s61
      %s79 = sphi 0, %s79
      %s81 = sphi 0, %s79
      %s82 = sphi 0, %s81
      %s96 = sphi 0, %s82
      %s104 = sphi 0, %s106
      %s107 = sphi 0, %s104
      %s108 = sphi 0, %s107
      %s124 = sphi 0, %s108
    $region4: #{patch_embedding_forward.1} parent=1 // loop_header_branch
      %15 = sbr.rel (%p13) target = $region8
    $region5: #{patch_embedding_forward.1} parent=1 // loop_body
      %s17 = ssub.s32 %s12, 1
      %s18 = ssub.s32 %s12, 2
      %s25 = sadd.s32 1, %s20
      %p26 = scmp.ge.s32.totalorder %s25, 1
      %s27 = scalar_select %p26, 0, %s25
      %s28 = sadd.s32 1, %s19
      %s29 = scalar_select %p26, %s28, %s19
      %p30 = scmp.ge.s32.totalorder %s29, 2
      %s31 = scalar_select %p30, 0, %s29
      %s32 = ssub.s32 %s19, %s31
      %p33 = scmp.eq.s32.totalorder %s32, 0
      %s35 = sadd.s32 %s34, 1
      %s36 = scalar_select %p33, %s34, %s35
      %p39 = pneg %p33
      %p40 = scmp.eq.s32.totalorder %s12, 1
      %p41 = por %p39, %p40
      %p42 = scmp.ne.s32.totalorder %s34, %s37
      %p43 = scmp.eq.s32.totalorder %s12, 0
      %p44 = por %p42, %p43
      %p45 = scmp.ne.s32.totalorder %s34, %s37
      %p46 = scmp.eq.s32.totalorder %s17, 1
      %p47 = por %p45, %p46
      %p48 = scmp.ne.s32.totalorder %s37, %s38
      %p49 = scmp.eq.s32.totalorder %s17, 0
      %p50 = por %p48, %p49
      %p51 = scmp.ne.s32.totalorder %s37, %s38
      %p52 = scmp.eq.s32.totalorder %s18, 1
      %p53 = por %p51, %p52
      %p55 = scmp.ne.s32.totalorder %s38, %s54
      %p56 = scmp.eq.s32.totalorder %s18, 0
      %p57 = por %p55, %p56
      %s59 = sadd.s32 %s58, 1
      %p62 = scmp.eq.s32.totalorder %s12, 1
      %p63 = scmp.ne.s32.totalorder %s58, %s60
      %p64 = scmp.eq.s32.totalorder %s12, 0
      %p65 = por %p63, %p64
      %p66 = scmp.ne.s32.totalorder %s58, %s60
      %p67 = scmp.eq.s32.totalorder %s17, 1
      %p68 = por %p66, %p67
      %p69 = scmp.ne.s32.totalorder %s60, %s61
      %p70 = scmp.eq.s32.totalorder %s17, 0
      %p71 = por %p69, %p70
      %p72 = scmp.ne.s32.totalorder %s60, %s61
      %p73 = scmp.eq.s32.totalorder %s18, 1
      %p74 = por %p72, %p73
      %p76 = scmp.ne.s32.totalorder %s61, %s75
      %p77 = scmp.eq.s32.totalorder %s18, 0
      %p78 = por %p76, %p77
      %s80 = sadd.s32 %s79, 1
      %p83 = scmp.eq.s32.totalorder %s12, 1
      %p84 = scmp.ne.s32.totalorder %s79, %s81
      %p85 = scmp.eq.s32.totalorder %s12, 0
      %p86 = por %p84, %p85
      %p87 = scmp.ne.s32.totalorder %s79, %s81
      %p88 = scmp.eq.s32.totalorder %s17, 1
      %p89 = por %p87, %p88
      %p90 = scmp.ne.s32.totalorder %s81, %s82
      %p91 = scmp.eq.s32.totalorder %s17, 0
      %p92 = por %p90, %p91
      %p93 = scmp.ne.s32.totalorder %s81, %s82
      %p94 = scmp.eq.s32.totalorder %s18, 1
      %p95 = por %p93, %p94
      %p97 = scmp.ne.s32.totalorder %s82, %s96
      %p98 = scmp.eq.s32.totalorder %s18, 0
      %p99 = por %p97, %p98
      %s100 = ssub.s32 %s19, %s31
      %s101 = ssub.s32 %s20, %s27
      %s102 = sor.u32 %s100, %s101
      %p103 = scmp.eq.s32.totalorder %s102, 0
      %s105 = sadd.s32 %s104, 1
      %s106 = scalar_select %p103, %s104, %s105
      %p109 = pneg %p103
      %p110 = scmp.eq.s32.totalorder %s12, 1
      %p111 = por %p109, %p110
      %p112 = scmp.ne.s32.totalorder %s104, %s107
      %p113 = scmp.eq.s32.totalorder %s12, 0
      %p114 = por %p112, %p113
      %p115 = scmp.ne.s32.totalorder %s104, %s107
      %p116 = scmp.eq.s32.totalorder %s17, 1
      %p117 = por %p115, %p116
      %p118 = scmp.ne.s32.totalorder %s107, %s108
      %p119 = scmp.eq.s32.totalorder %s17, 0
      %p120 = por %p118, %p119
      %p121 = scmp.ne.s32.totalorder %s107, %s108
      %p122 = scmp.eq.s32.totalorder %s18, 1
      %p123 = por %p121, %p122
      %p125 = scmp.ne.s32.totalorder %s108, %s124
      %p126 = scmp.eq.s32.totalorder %s18, 0
      %p127 = por %p125, %p126
      %p128 = scmp.le.s32.totalorder 1, %s12
      %p129 = scmp.lt.s32.totalorder %s12, 3
      %p130 = pnand %p128, %p129
      %p131 = pneg %p130
      // Predicated region
      $region9: #{patch_embedding_forward.1} parent=5 // pred_check
        _
      $region10: #{patch_embedding_forward.1} parent=5 // pred_check_branch
        %133 = sbr.rel (%p130) target = $region12
      $region11: #{patch_embedding_forward.1} parent=5 // pred_region
        %s134 = ssub.s32 %s12, 1
        // Predicated region
        $region13: #{patch_embedding_forward.1} parent=11 // pred_check
          %p135 = pneg %p71
        $region14: #{patch_embedding_forward.1} parent=11 // pred_check_branch
          %137 = sbr.rel (%p135) target = $region16
        $region15: #{patch_embedding_forward.1} parent=11 // pred_region
          _
        $region16: #{patch_embedding_forward.1} parent=11 // pred_fallthru
          _
        // Predicated region
        $region17: #{patch_embedding_forward.1} parent=11 // pred_check
          %p138 = pneg %p92
        $region18: #{patch_embedding_forward.1} parent=11 // pred_check_branch
          %140 = sbr.rel (%p138) target = $region20
        $region19: #{patch_embedding_forward.1} parent=11 // pred_region
          _
        $region20: #{patch_embedding_forward.1} parent=11 // pred_fallthru
          _
      $region12: #{patch_embedding_forward.1} parent=5 // pred_fallthru
        _
      %p141 = scmp.lt.s32.totalorder %s12, 2
      // Predicated region
      $region21: #{patch_embedding_forward.1} parent=5 // pred_check
        %p142 = pneg %p141
      $region22: #{patch_embedding_forward.1} parent=5 // pred_check_branch
        %144 = sbr.rel (%p142) target = $region24
      $region23: #{patch_embedding_forward.1} parent=5 // pred_region
        // Predicated region
        $region25: #{patch_embedding_forward.1} parent=23 // pred_check
          %p145 = pneg %p44
        $region26: #{patch_embedding_forward.1} parent=23 // pred_check_branch
          %147 = sbr.rel (%p145) target = $region28
        $region27: #{patch_embedding_forward.1} parent=23 // pred_region
          %p148 = scmp.lt.s32.totalorder %s19, 1
          %s149 = scalar_select %p148, %s19, 1
          %s150 = smul.addr %s149, 3
          %s151 = smul.addr %s150, 8
          %s152 = scalar_lea.vmem %s0, %s151
        $region28: #{patch_embedding_forward.1} parent=23 // pred_fallthru
          _
      $region24: #{patch_embedding_forward.1} parent=5 // pred_fallthru
        _
      %p153 = scmp.le.s32.totalorder 1, %s12
      %p154 = scmp.lt.s32.totalorder %s12, 3
      %p155 = pnand %p153, %p154
      %p156 = pneg %p155
      // Predicated region
      $region29: #{patch_embedding_forward.1} parent=5 // pred_check
        _
      $region30: #{patch_embedding_forward.1} parent=5 // pred_check_branch
        %158 = sbr.rel (%p155) target = $region32
      $region31: #{patch_embedding_forward.1} parent=5 // pred_region
        %s159 = ssub.s32 %s12, 1
        %p160 = scmp.lt.s32.totalorder %s21, 1
        %s161 = scalar_select %p160, %s21, 1
        %s162 = smul.addr %s161, 3
        %s163 = smul.addr %s162, 8
        %s164 = scalar_lea.vmem %s0, %s163
        %p165 = pneg %p50
        %p166 = pneg %p47
        %p167 = pneg %p71
        %p168 = pneg %p68
        %p169 = pneg %p92
        %p170 = pneg %p89
        %p171 = pneg %p120
        %p172 = pneg %p117
        %s173 = sand.u32 %s107, 1
        %s174 = scalar_lea.sflag [#allocation3], %s173
        %s175 = sand.u32 %s107, 1
        %s176 = smul.addr %s175, 16
        %s177 = scalar_lea.vmem [#allocation2], %s176
        %p178 = scmp.lt.s32.totalorder %s21, 1
        %s179 = scalar_select %p178, %s21, 1
        %s180 = smul.addr %s179, 3
        %s181 = smul.addr %s180, 8
        %s182 = scalar_lea.vmem %s0, %s181
        %s183 = smul.u32 2, %s22
        %s184 = smul.u32 %s22, 16
        %s185 = scalar_lea.vmem %s182, %s184
        %v186 = vld [vmem:[%s185] sm:$0xff]
        %v187 = vld [vmem:[%s185 + $0x8] sm:$0xff]
        %v188 = vld [vmem:[%s1] sm:$0xf]
        %s189 = sadd.s32 %s184, 1
        %s190 = scalar_lea.vmem %s182, %s189
        %v191 = vld [vmem:[%s190] sm:$0xff]
        %v192 = vld [vmem:[%s190 + $0x8] sm:$0xff]
        %s193 = scalar_lea.vmem %s1, 4
        %v194 = vld [vmem:[%s193] sm:$0xf]
        %vm195 = vcmask 31744
        %v197 = vsel %vm195, %v191, 0
        %v200 = vsel %vm195, %v192, 0
        %vm202 = vcmask 1043456
        %v204 = vsel %vm202, %v194, 0
        %206 = vmatpush.msra.mxu0 0.0
        %207 = vmatpush.msra.mxu0 0.0
        %208 = vmatpush.msra.mxu0 0.0
        %209 = vmatpush.msra.mxu0 0.0
        %210 = vmatpush.msra.mxu0 0.0
        %211 = vmatpush.msra.mxu0 0.0
        %212 = vmatpush.msra.mxu0 0.0
        %213 = vmatpush.msra.mxu0 0.0
        %214 = vmatpush.msra.mxu0 0.0
        %215 = vmatpush.msra.mxu0 0.0
        %216 = vmatpush.msra.mxu0 0.0
        %217 = vmatpush.msra.mxu0 0.0
        %218 = vmatpush.msra.mxu0 0.0
        %219 = vmatpush.msra.mxu0 0.0
        %220 = vmatpush.msra.mxu0 0.0
        %221 = vmatpush.msra.mxu0 %v204
        %222 = vmatmul.f32.gmra.mxu0 %v197
        %v223 = vpop.f32.mrf.mxu0
        %v224 = vadd.f32 0.0, %v223
        %225 = vmatmul.f32.gmra.mxu0 %v200
        %v226 = vpop.f32.mrf.mxu0
        %v227 = vadd.f32 0.0, %v226
        %228 = vdwg.mxu0
        %v230 = vsel %vm195, %v186, 0
        %v233 = vsel %vm195, %v187, 0
        %v236 = vsel %vm202, %v188, 0
        %238 = vmatpush.msra.mxu0 0.0
        %239 = vmatpush.msra.mxu0 0.0
        %240 = vmatpush.msra.mxu0 0.0
        %241 = vmatpush.msra.mxu0 0.0
        %242 = vmatpush.msra.mxu0 0.0
        %243 = vmatpush.msra.mxu0 0.0
        %244 = vmatpush.msra.mxu0 0.0
        %245 = vmatpush.msra.mxu0 0.0
        %246 = vmatpush.msra.mxu0 0.0
        %247 = vmatpush.msra.mxu0 0.0
        %248 = vmatpush.msra.mxu0 0.0
        %249 = vmatpush.msra.mxu0 0.0
        %250 = vmatpush.msra.mxu0 0.0
        %251 = vmatpush.msra.mxu0 0.0
        %252 = vmatpush.msra.mxu0 0.0
        %253 = vmatpush.msra.mxu0 %v236
        %254 = vmatmul.f32.gmra.mxu0 %v230
        %v255 = vpop.f32.mrf.mxu0
        %v256 = vadd.f32 %v224, %v255
        %257 = vmatmul.f32.gmra.mxu0 %v233
        %v258 = vpop.f32.mrf.mxu0
        %v259 = vadd.f32 %v227, %v258
        %260 = vdwg.mxu0
        %s261 = sadd.s32 %s184, 2
        %s262 = scalar_lea.vmem %s182, %s261
        %v263 = vld [vmem:[%s262] sm:$0xff]
        %v264 = vld [vmem:[%s262 + $0x8] sm:$0xff]
        %s265 = scalar_lea.vmem %s1, 8
        %v266 = vld [vmem:[%s265] sm:$0xf]
        %v268 = vsel %vm195, %v263, 0
        %v271 = vsel %vm195, %v264, 0
        %v274 = vsel %vm202, %v266, 0
        %276 = vmatpush.msra.mxu0 0.0
        %277 = vmatpush.msra.mxu0 0.0
        %278 = vmatpush.msra.mxu0 0.0
        %279 = vmatpush.msra.mxu0 0.0
        %280 = vmatpush.msra.mxu0 0.0
        %281 = vmatpush.msra.mxu0 0.0
        %282 = vmatpush.msra.mxu0 0.0
        %283 = vmatpush.msra.mxu0 0.0
        %284 = vmatpush.msra.mxu0 0.0
        %285 = vmatpush.msra.mxu0 0.0
        %286 = vmatpush.msra.mxu0 0.0
        %287 = vmatpush.msra.mxu0 0.0
        %288 = vmatpush.msra.mxu0 0.0
        %289 = vmatpush.msra.mxu0 0.0
        %290 = vmatpush.msra.mxu0 0.0
        %291 = vmatpush.msra.mxu0 %v274
        %292 = vmatmul.f32.gmra.mxu0 %v268
        %v293 = vpop.f32.mrf.mxu0
        %v294 = vadd.f32 0.0, %v293
        %295 = vmatmul.f32.gmra.mxu0 %v271
        %v296 = vpop.f32.mrf.mxu0
        %v297 = vadd.f32 0.0, %v296
        %298 = vdwg.mxu0
        %v299 = vadd.f32 %v256, %v294
        %v300 = vadd.f32 %v259, %v297
        %v301 = vld [vmem:[%s2] sm:$0x1]
        %v303 = vperm.slane %v301, 0
        %v305 = vadd.f32 %v299, %v303
        %v306 = vadd.f32 %v300, %v303
        %vm307 = vcmask 261120
        %308 = vst.msk [vmem:[%s177] sm:$0xff] %vm307, %v305
        %309 = vst.msk [vmem:[%s177 + $0x8] sm:$0xff] %vm307, %v306
        %s310 = sand.u32 %s107, 1
        %s311 = scalar_lea.sflag [#allocation3], %s310
        %s312 = sand.u32 %s107, 1
        %s313 = smul.addr %s312, 16
        %s314 = scalar_lea.vmem [#allocation2], %s313
        // Predicated region
        $region33: #{patch_embedding_forward.1} parent=31 // pred_check
          %p315 = pneg %p117
        $region34: #{patch_embedding_forward.1} parent=31 // pred_check_branch
          %317 = sbr.rel (%p315) target = $region36
        $region35: #{patch_embedding_forward.1} parent=31 // pred_region
          %s318 = smul.u32 2, %s22
          %320 = vsyncadd %s311, 0
          %s321 = smul.addr %s21, 2
          %s322 = sadd.s32 %s318, %s321
          %s323 = smul.addr %s322, 8
          %s324 = scalar_lea.hbm %s3, %s323
          %s325 = sshll.u32 %s314, 4
          %s326 = int_to_ptr.vmem [resolvable:$true] %s325
          %s327 = sshll.u32 %s324, 4
          %s328 = int_to_ptr.hbm [resolvable:$true] %s327
          %333 = dma.vmem_to_hbm [thread:$0]  %s326, 256, %s328, %s311, 128, 128, 8
        $region36: #{patch_embedding_forward.1} parent=31 // pred_fallthru
          _
      $region32: #{patch_embedding_forward.1} parent=5 // pred_fallthru
        _
      %p334 = scmp.le.s32.totalorder 2, %s12
      // Predicated region
      $region37: #{patch_embedding_forward.1} parent=5 // pred_check
        %p335 = pneg %p334
      $region38: #{patch_embedding_forward.1} parent=5 // pred_check_branch
        %337 = sbr.rel (%p335) target = $region40
      $region39: #{patch_embedding_forward.1} parent=5 // pred_region
        %s338 = ssub.s32 %s12, 2
        // Predicated region
        $region41: #{patch_embedding_forward.1} parent=39 // pred_check
          %p339 = pneg %p123
        $region42: #{patch_embedding_forward.1} parent=39 // pred_check_branch
          %341 = sbr.rel (%p339) target = $region44
        $region43: #{patch_embedding_forward.1} parent=39 // pred_region
          %s342 = sand.u32 %s108, 1
          %s343 = scalar_lea.sflag [#allocation3], %s342
          %s344 = sand.u32 %s108, 1
          %s345 = smul.addr %s344, 16
          %s346 = scalar_lea.vmem [#allocation2], %s345
          %348 = dma.done %s343, 256
        $region44: #{patch_embedding_forward.1} parent=39 // pred_fallthru
          _
      $region40: #{patch_embedding_forward.1} parent=5 // pred_fallthru
        _
    $region6: #{patch_embedding_forward.1} parent=1 // loop_footer
      %s16 = sadd.s32 1, %s12
    $region7: #{patch_embedding_forward.1} parent=1 // loop_footer_branch
      %11 = sbr.rel target = $region3
    $region8: #{patch_embedding_forward.1} parent=1 // loop_exit
      _
    %349 = vsyncpa [#allocation3], 1
    %s350 = scalar_lea.sflag [#allocation3], 1
    %351 = vsyncpa %s350, 1

</llo_original>
